<compile_context>
chip_gen: v6e
topology: v6e:2x2x1
jax: 0.10.0
libtpu: 0.0.40
codegen_flags: <defaults>
</compile_context>

<pallas_src>
import jax
import jax.numpy as jnp
from jax import lax
from jax.experimental import pallas as pl
from jax.experimental.pallas import tpu as pltpu


def _vq_kernel(z_ref, em2_ref, cbt_ref, esq_ref, out_ref):
    """One (batch, column-tile) step of the quantizer, fully lane-dense.

    z_ref:   (D, TN)  channel-major column tile of one batch (NCHW view)
    em2_ref: (K, D)   -2 * codebook          (precomputed, resident)
    cbt_ref: (D, K)   codebook transposed    (precomputed, resident)
    esq_ref: (K, 1)   per-code squared norms (precomputed, resident)
    out_ref: (D, TN)  nearest codebook entry per column, channel-major
    """
    zt = z_ref[...].astype(jnp.float32)      # (D, TN)
    em2 = em2_ref[...].astype(jnp.float32)   # (K, D)
    et = cbt_ref[...].astype(jnp.float32)    # (D, K)
    esq = esq_ref[...].astype(jnp.float32)   # (K, 1)

    k = em2.shape[0]
    tn = zt.shape[1]

    # d^T = ||e||^2 - 2 e.z   (the per-column ||z||^2 constant is dropped; it
    # does not change the argmin).  The -2 is pre-folded into the codebook so
    # this is one canonical MXU matmul plus a broadcast add.
    d_t = lax.dot_general(
        em2, zt, dimension_numbers=(((1,), (0,)), ((), ())),
        preferred_element_type=jnp.float32) + esq                 # (K, TN)

    # First-index argmin over K (sublane axis) -- matches torch.argmin.
    iota_k = lax.broadcasted_iota(jnp.int32, (k, tn), 0)          # (K, TN)
    d_min = jnp.min(d_t, axis=0, keepdims=True)                   # (1, TN)
    idx = jnp.min(jnp.where(d_t == d_min, iota_k, k),
                  axis=0, keepdims=True)                          # (1, TN)

    # Gather codebook rows via an EXCLUSIVE one-hot matmul (built from idx so
    # ties never sum multiple rows):  (D, K) @ (K, TN) -> (D, TN).
    onehot_t = (iota_k == idx).astype(jnp.float32)                # (K, TN)
    zq_t = lax.dot_general(
        et, onehot_t, dimension_numbers=(((1,), (0,)), ((), ())),
        preferred_element_type=jnp.float32)                       # (D, TN)

    out_ref[...] = zq_t.astype(out_ref.dtype)


def quantizer_forward(z, codebook, *, tile_n=16384):
    """z: (B, D, H, W) NCHW, codebook: (K, D). Returns z_q of shape z.shape."""
    B, D, H, W = z.shape
    K, D2 = codebook.shape
    assert D == D2, "embedding_dim mismatch"
    HW = H * W

    # Free, contiguous view of the NCHW input -- no relayout pass before the
    # kernel.  Column n of batch b is z_flattened row (b*HW + n).
    z_r = z.reshape(B, D, HW)

    cb32 = codebook.astype(jnp.float32)
    e_m2 = -2.0 * cb32                                  # (K, D), tiny
    cb_t = jnp.transpose(cb32, (1, 0))                  # (D, K), tiny
    e_sq = jnp.sum(cb32 * cb32, axis=1, keepdims=True)  # (K, 1)

    # Column tile over H*W: full extent if it fits, otherwise a large multiple
    # of 128 so the per-grid-step pipeline overhead is amortised.  The batch
    # axis provides the second "parallel" grid dim (megacore on v7x); the last
    # partial HW tile is handled by Pallas (padded cols are never written).
    if HW <= int(tile_n):
        tn = HW
    else:
        tn = max((int(tile_n) // 128) * 128, 128)
    grid = (B, pl.cdiv(HW, tn))

    # VMEM budget: IO blocks are tiny (D x tn); the dominant live temporaries
    # are a handful of (K, tn) f32 tiles.  Leave headroom, stay under every
    # generation's physical VMEM (64 MiB/TC on v7x).
    est = 8 * K * tn * 4 + 8 * D * tn * 4 + 8 * K * D * 4
    vmem_limit = int(min(max(est, 32 * 1024 * 1024), 64 * 1024 * 1024))

    cost = pl.CostEstimate(
        flops=4 * B * HW * K * D,                 # distance dot + one-hot gather
        transcendentals=0,
        bytes_accessed=(2 * B * HW * D * z.dtype.itemsize
                        + 3 * K * D * 4 + K * 4),
    )

    zq = pl.pallas_call(
        _vq_kernel,
        out_shape=jax.ShapeDtypeStruct((B, D, HW), z.dtype),
        grid_spec=pltpu.PrefetchScalarGridSpec(
            num_scalar_prefetch=0,
            grid=grid,
            in_specs=[
                # (None -> squeezed batch dim): kernel sees a (D, tn) tile.
                pl.BlockSpec((None, D, tn), lambda b, i: (b, 0, i)),
                pl.BlockSpec((K, D), lambda b, i: (0, 0)),   # -2*codebook (resident)
                pl.BlockSpec((D, K), lambda b, i: (0, 0)),   # codebook^T  (resident)
                pl.BlockSpec((K, 1), lambda b, i: (0, 0)),   # ||e||^2     (resident)
            ],
            out_specs=pl.BlockSpec((None, D, tn), lambda b, i: (b, 0, i)),
        ),
        compiler_params=pltpu.CompilerParams(
            dimension_semantics=("parallel", "parallel"),
            vmem_limit_bytes=vmem_limit),
        cost_estimate=cost,
    )(z_r, e_m2, cb_t, e_sq)

    # Exact PyTorch semantics: `.view(z.shape)` on the (N, D) gather result
    # -> relayout channel-major -> (n, c)-major, then plain reshape with NO
    # inverse permute (bug-compatible).  This is the one remaining relayout
    # pass over the output.
    return jnp.transpose(zq, (0, 2, 1)).reshape(B, D, H, W)


def _reference(z, codebook):
    """Pure-JAX reference mirroring the PyTorch forward."""
    B, D, H, W = z.shape
    zf = jnp.transpose(z, (0, 2, 3, 1)).reshape(-1, D)
    d = (jnp.sum(zf ** 2, axis=1, keepdims=True)
         + jnp.sum(codebook ** 2, axis=1)
         - 2.0 * zf @ codebook.T)
    idx = jnp.argmin(d, axis=1)
    return codebook[idx].reshape(z.shape)


if __name__ == "__main__":
    # Small, deterministic setup consistent with the module:
    #   num_embeddings (K) = 32, embedding_dim (D) = 4, z: (2, 4, 16, 16) NCHW.
    key = jax.random.PRNGKey(0)
    k_cb, k_z = jax.random.split(key)

    num_embeddings = 32
    embedding_dim = 4
    B, H, W = 2, 16, 16

    # nn.Embedding default init: N(0, 1).
    codebook = jax.random.normal(k_cb, (num_embeddings, embedding_dim),
                                 dtype=jnp.float32)
    z = jax.random.normal(k_z, (B, embedding_dim, H, W), dtype=jnp.float32)

    z_q = quantizer_forward(z, codebook)
    z_q = jax.block_until_ready(z_q)

    ref = _reference(z, codebook)
    assert z_q.shape == z.shape
    assert jnp.allclose(z_q, ref, atol=1e-5, rtol=1e-5), "mismatch vs reference"

    print("KERNEL_OK")
</pallas_src>

<mosaic_0001>
module attributes {stable_mosaic.version = 11 : i64} {
  func.func @_vq_kernel(%arg0: i32, %arg1: i32, %arg2: memref<1x4x256xf32, #tpu.memory_space<vmem>>, %arg3: memref<32x4xf32, #tpu.memory_space<vmem>>, %arg4: memref<4x32xf32, #tpu.memory_space<vmem>>, %arg5: memref<32x1xf32, #tpu.memory_space<vmem>>, %arg6: memref<1x4x256xf32, #tpu.memory_space<vmem>>) attributes {dimension_semantics = [#tpu.dimension_semantics<parallel>, #tpu.dimension_semantics<parallel>], iteration_bounds = array<i64: 2, 1>, scalar_prefetch = 0 : i64, scratch_operands = 0 : i64, tpu.core_type = #tpu.core_type<tc>, window_params = [{transform_indices = @transform_0, window_bounds = array<i64: 1, 4, 256>}, {pipeline_mode = #tpu.pipeline_mode<synchronous>, transform_indices = @transform_1, window_bounds = array<i64: 32, 4>}, {pipeline_mode = #tpu.pipeline_mode<synchronous>, transform_indices = @transform_2, window_bounds = array<i64: 4, 32>}, {pipeline_mode = #tpu.pipeline_mode<synchronous>, transform_indices = @transform_3, window_bounds = array<i64: 32, 1>}, {transform_indices = @transform_4, window_bounds = array<i64: 1, 4, 256>}]} {
    %c0 = arith.constant 0 : index
    %c0_0 = arith.constant 0 : index
    %c0_1 = arith.constant 0 : index
    %0 = vector.load %arg2[%c0, %c0_0, %c0_1] : memref<1x4x256xf32, #tpu.memory_space<vmem>>, vector<1x4x256xf32>
    %1 = vector.shape_cast %0 : vector<1x4x256xf32> to vector<4x256xf32>
    %c0_2 = arith.constant 0 : index
    %c0_3 = arith.constant 0 : index
    %2 = vector.load %arg3[%c0_2, %c0_3] : memref<32x4xf32, #tpu.memory_space<vmem>>, vector<32x4xf32>
    %c0_4 = arith.constant 0 : index
    %c0_5 = arith.constant 0 : index
    %3 = vector.load %arg4[%c0_4, %c0_5] : memref<4x32xf32, #tpu.memory_space<vmem>>, vector<4x32xf32>
    %c0_6 = arith.constant 0 : index
    %c0_7 = arith.constant 0 : index
    %4 = vector.load %arg5[%c0_6, %c0_7] : memref<32x1xf32, #tpu.memory_space<vmem>>, vector<32x1xf32>
    %cst = arith.constant dense<0.000000e+00> : vector<32x256xf32>
    %5 = tpu.matmul %2, %1, %cst {dimension_numbers = #tpu.dot_dimension_numbers<[1], [0], [0], [1], [0, 0, 1, 1], [], []>} : vector<32x4xf32>, vector<4x256xf32>, vector<32x256xf32> -> vector<32x256xf32>
    %6 = vector.broadcast %4 : vector<32x1xf32> to vector<32x256xf32>
    %7 = arith.addf %5, %6 : vector<32x256xf32>
    %8 = tpu.iota {dimensions = array<i32: 0>} : vector<32x256xi32>
    %cst_8 = arith.constant dense<0x7F800000> : vector<256xf32>
    %9 = vector.multi_reduction <minimumf>, %7, %cst_8 [0] : vector<32x256xf32> to vector<256xf32>
    %10 = vector.shape_cast %9 : vector<256xf32> to vector<1x256xf32>
    %11 = vector.broadcast %10 : vector<1x256xf32> to vector<32x256xf32>
    %12 = arith.cmpf oeq, %7, %11 : vector<32x256xf32>
    %c32_i32 = arith.constant 32 : i32
    %13 = vector.broadcast %c32_i32 : i32 to vector<32x256xi32>
    %14 = arith.select %12, %8, %13 : vector<32x256xi1>, vector<32x256xi32>
    %cst_9 = arith.constant dense<2147483647> : vector<256xi32>
    %15 = vector.multi_reduction <minsi>, %14, %cst_9 [0] : vector<32x256xi32> to vector<256xi32>
    %16 = vector.shape_cast %15 : vector<256xi32> to vector<1x256xi32>
    %17 = vector.broadcast %16 : vector<1x256xi32> to vector<32x256xi32>
    %18 = arith.cmpi eq, %8, %17 : vector<32x256xi32>
    %19 = arith.extui %18 : vector<32x256xi1> to vector<32x256xi32>
    %20 = arith.sitofp %19 : vector<32x256xi32> to vector<32x256xf32>
    %cst_10 = arith.constant dense<0.000000e+00> : vector<4x256xf32>
    %21 = tpu.matmul %3, %20, %cst_10 {dimension_numbers = #tpu.dot_dimension_numbers<[1], [0], [0], [1], [0, 0, 1, 1], [], []>} : vector<4x32xf32>, vector<32x256xf32>, vector<4x256xf32> -> vector<4x256xf32>
    %c0_11 = arith.constant 0 : index
    %c0_12 = arith.constant 0 : index
    %c0_13 = arith.constant 0 : index
    %22 = vector.load %arg6[%c0_11, %c0_12, %c0_13] : memref<1x4x256xf32, #tpu.memory_space<vmem>>, vector<1x4x256xf32>
    %23 = vector.shape_cast %22 : vector<1x4x256xf32> to vector<4x256xf32>
    %24 = vector.shape_cast %21 : vector<4x256xf32> to vector<1x4x256xf32>
    tpu.vector_store %arg6[%c0_11, %c0_12, %c0_13], %24 {strides = array<i32>} : memref<1x4x256xf32, #tpu.memory_space<vmem>>, vector<1x4x256xf32>,
    return
  }
  func.func @transform_0(%arg0: i32, %arg1: i32) -> (i32, i32, i32) {
    %c0_i32 = arith.constant 0 : i32
    %c0_i32_0 = arith.constant 0 : i32
    return %arg0, %c0_i32, %arg1 : i32, i32, i32
  }
  func.func @transform_1(%arg0: i32, %arg1: i32) -> (i32, i32) {
    %c0_i32 = arith.constant 0 : i32
    %c0_i32_0 = arith.constant 0 : i32
    %c0_i32_1 = arith.constant 0 : i32
    return %c0_i32, %c0_i32_0 : i32, i32
  }
  func.func @transform_2(%arg0: i32, %arg1: i32) -> (i32, i32) {
    %c0_i32 = arith.constant 0 : i32
    %c0_i32_0 = arith.constant 0 : i32
    %c0_i32_1 = arith.constant 0 : i32
    return %c0_i32, %c0_i32_0 : i32, i32
  }
  func.func @transform_3(%arg0: i32, %arg1: i32) -> (i32, i32) {
    %c0_i32 = arith.constant 0 : i32
    %c0_i32_0 = arith.constant 0 : i32
    %c0_i32_1 = arith.constant 0 : i32
    return %c0_i32, %c0_i32_0 : i32, i32
  }
  func.func @transform_4(%arg0: i32, %arg1: i32) -> (i32, i32, i32) {
    %c0_i32 = arith.constant 0 : i32
    %c0_i32_0 = arith.constant 0 : i32
    return %arg0, %c0_i32, %arg1 : i32, i32, i32
  }
}

</mosaic_0001>

<llo_original>
// kernel: tpu_custom_call.1
$region0: #{tpu_custom_call.1}
  #allocation0 [shape = 'u32[]', space=smem, size = 0x4, offset = 0x4, fixed_abs, tag = 'smem constant byte address 0x4 - core index']
  #allocation1 [shape = 'u32[144,128]{1,0:T(1,128)}', space=vmem, size = 0x12000, scoped, tag = 'internal scratch']
  %s0 = inlined_call_operand.vmem [shape: f32[2,4,256], index: 0, kind: input, shape index: {}]
  %s1 = inlined_call_operand.vmem [shape: f32[32,4], index: 1, kind: input, shape index: {}]
  %s2 = inlined_call_operand.vmem [shape: f32[4,32], index: 2, kind: input, shape index: {}]
  %s3 = inlined_call_operand.vmem [shape: f32[32,1], index: 3, kind: input, shape index: {}]
  %s4 = inlined_call_operand.hbm [shape: f32[2,4,256], index: 4, kind: output, shape index: {}]
  %s5 = sld [smem:[#allocation0]]
  $region49: #{tpu_custom_call.1} parent=0
    _
  %s7 = ssub.s32 1, %s5
  %s8 = scalar_select 0, %s7, %s5
  $region1: #{tpu_custom_call.1} parent=0
    #allocation2 [shape = 'u8[8192]{0}', space=vmem, size = 0x2000, scoped, tag = 'output window, operand 0']
    #allocation3 [shape = 's32[2]{0}', space=sflag, size = 0x8, scoped, tag = 'scoped memory for tpu_custom_call.1']
    %9 = vsyncpa [#allocation3], 0
    %s10 = scalar_lea.sflag [#allocation3], 1
    %11 = vsyncpa %s10, 0
    loop: start=0, step=1, limit=4
    $region2: #{tpu_custom_call.1} parent=1 // loop_pre_header
      _
    $region3: #{tpu_custom_call.1} parent=1 // loop_header
      %s13 = sphi 0, %s17
      %p14 = scmp.ge.s32.totalorder %s13, 4
      %s20 = sphi 0, %s32
      %s21 = sphi 0, %s28
      %s22 = sphi 0, %s20
      %s23 = sphi 0, %s21
      %s24 = sphi 0, %s22
      %s25 = sphi 0, %s23
      %s37 = sphi 0, %s39
      %s40 = sphi 0, %s37
      %s41 = sphi 0, %s40
      %s57 = sphi 0, %s41
      %s61 = sphi 0, %s61
      %s63 = sphi 0, %s61
      %s64 = sphi 0, %s63
      %s78 = sphi 0, %s64
      %s82 = sphi 0, %s82
      %s84 = sphi 0, %s82
      %s85 = sphi 0, %s84
      %s99 = sphi 0, %s85
      %s103 = sphi 0, %s103
      %s105 = sphi 0, %s103
      %s106 = sphi 0, %s105
      %s120 = sphi 0, %s106
      %s128 = sphi 0, %s130
      %s131 = sphi 0, %s128
      %s132 = sphi 0, %s131
      %s148 = sphi 0, %s132
    $region4: #{tpu_custom_call.1} parent=1 // loop_header_branch
      %16 = sbr.rel (%p14) target = $region8
    $region5: #{tpu_custom_call.1} parent=1 // loop_body
      %s18 = ssub.s32 %s13, 1
      %s19 = ssub.s32 %s13, 2
      %s26 = sadd.s32 1, %s21
      %p27 = scmp.ge.s32.totalorder %s26, 1
      %s28 = scalar_select %p27, 0, %s26
      %s29 = sadd.s32 1, %s20
      %s30 = scalar_select %p27, %s29, %s20
      %p31 = scmp.ge.s32.totalorder %s30, 2
      %s32 = scalar_select %p31, 0, %s30
      %s33 = ssub.s32 %s20, %s32
      %s34 = ssub.s32 %s21, %s28
      %s35 = sor.u32 %s33, %s34
      %p36 = scmp.eq.s32.totalorder %s35, 0
      %s38 = sadd.s32 %s37, 1
      %s39 = scalar_select %p36, %s37, %s38
      %p42 = pneg %p36
      %p43 = scmp.eq.s32.totalorder %s13, 1
      %p44 = por %p42, %p43
      %p45 = scmp.ne.s32.totalorder %s37, %s40
      %p46 = scmp.eq.s32.totalorder %s13, 0
      %p47 = por %p45, %p46
      %p48 = scmp.ne.s32.totalorder %s37, %s40
      %p49 = scmp.eq.s32.totalorder %s18, 1
      %p50 = por %p48, %p49
      %p51 = scmp.ne.s32.totalorder %s40, %s41
      %p52 = scmp.eq.s32.totalorder %s18, 0
      %p53 = por %p51, %p52
      %p54 = scmp.ne.s32.totalorder %s40, %s41
      %p55 = scmp.eq.s32.totalorder %s19, 1
      %p56 = por %p54, %p55
      %p58 = scmp.ne.s32.totalorder %s41, %s57
      %p59 = scmp.eq.s32.totalorder %s19, 0
      %p60 = por %p58, %p59
      %s62 = sadd.s32 %s61, 1
      %p65 = scmp.eq.s32.totalorder %s13, 1
      %p66 = scmp.ne.s32.totalorder %s61, %s63
      %p67 = scmp.eq.s32.totalorder %s13, 0
      %p68 = por %p66, %p67
      %p69 = scmp.ne.s32.totalorder %s61, %s63
      %p70 = scmp.eq.s32.totalorder %s18, 1
      %p71 = por %p69, %p70
      %p72 = scmp.ne.s32.totalorder %s63, %s64
      %p73 = scmp.eq.s32.totalorder %s18, 0
      %p74 = por %p72, %p73
      %p75 = scmp.ne.s32.totalorder %s63, %s64
      %p76 = scmp.eq.s32.totalorder %s19, 1
      %p77 = por %p75, %p76
      %p79 = scmp.ne.s32.totalorder %s64, %s78
      %p80 = scmp.eq.s32.totalorder %s19, 0
      %p81 = por %p79, %p80
      %s83 = sadd.s32 %s82, 1
      %p86 = scmp.eq.s32.totalorder %s13, 1
      %p87 = scmp.ne.s32.totalorder %s82, %s84
      %p88 = scmp.eq.s32.totalorder %s13, 0
      %p89 = por %p87, %p88
      %p90 = scmp.ne.s32.totalorder %s82, %s84
      %p91 = scmp.eq.s32.totalorder %s18, 1
      %p92 = por %p90, %p91
      %p93 = scmp.ne.s32.totalorder %s84, %s85
      %p94 = scmp.eq.s32.totalorder %s18, 0
      %p95 = por %p93, %p94
      %p96 = scmp.ne.s32.totalorder %s84, %s85
      %p97 = scmp.eq.s32.totalorder %s19, 1
      %p98 = por %p96, %p97
      %p100 = scmp.ne.s32.totalorder %s85, %s99
      %p101 = scmp.eq.s32.totalorder %s19, 0
      %p102 = por %p100, %p101
      %s104 = sadd.s32 %s103, 1
      %p107 = scmp.eq.s32.totalorder %s13, 1
      %p108 = scmp.ne.s32.totalorder %s103, %s105
      %p109 = scmp.eq.s32.totalorder %s13, 0
      %p110 = por %p108, %p109
      %p111 = scmp.ne.s32.totalorder %s103, %s105
      %p112 = scmp.eq.s32.totalorder %s18, 1
      %p113 = por %p111, %p112
      %p114 = scmp.ne.s32.totalorder %s105, %s106
      %p115 = scmp.eq.s32.totalorder %s18, 0
      %p116 = por %p114, %p115
      %p117 = scmp.ne.s32.totalorder %s105, %s106
      %p118 = scmp.eq.s32.totalorder %s19, 1
      %p119 = por %p117, %p118
      %p121 = scmp.ne.s32.totalorder %s106, %s120
      %p122 = scmp.eq.s32.totalorder %s19, 0
      %p123 = por %p121, %p122
      %s124 = ssub.s32 %s20, %s32
      %s125 = ssub.s32 %s21, %s28
      %s126 = sor.u32 %s124, %s125
      %p127 = scmp.eq.s32.totalorder %s126, 0
      %s129 = sadd.s32 %s128, 1
      %s130 = scalar_select %p127, %s128, %s129
      %p133 = pneg %p127
      %p134 = scmp.eq.s32.totalorder %s13, 1
      %p135 = por %p133, %p134
      %p136 = scmp.ne.s32.totalorder %s128, %s131
      %p137 = scmp.eq.s32.totalorder %s13, 0
      %p138 = por %p136, %p137
      %p139 = scmp.ne.s32.totalorder %s128, %s131
      %p140 = scmp.eq.s32.totalorder %s18, 1
      %p141 = por %p139, %p140
      %p142 = scmp.ne.s32.totalorder %s131, %s132
      %p143 = scmp.eq.s32.totalorder %s18, 0
      %p144 = por %p142, %p143
      %p145 = scmp.ne.s32.totalorder %s131, %s132
      %p146 = scmp.eq.s32.totalorder %s19, 1
      %p147 = por %p145, %p146
      %p149 = scmp.ne.s32.totalorder %s132, %s148
      %p150 = scmp.eq.s32.totalorder %s19, 0
      %p151 = por %p149, %p150
      %p152 = scmp.le.s32.totalorder 1, %s13
      %p153 = scmp.lt.s32.totalorder %s13, 3
      %p154 = pnand %p152, %p153
      %p155 = pneg %p154
      // Predicated region
      $region9: #{tpu_custom_call.1} parent=5 // pred_check
        _
      $region10: #{tpu_custom_call.1} parent=5 // pred_check_branch
        %157 = sbr.rel (%p154) target = $region12
      $region11: #{tpu_custom_call.1} parent=5 // pred_region
        %s158 = ssub.s32 %s13, 1
        // Predicated region
        $region13: #{tpu_custom_call.1} parent=11 // pred_check
          %p159 = pneg %p74
        $region14: #{tpu_custom_call.1} parent=11 // pred_check_branch
          %161 = sbr.rel (%p159) target = $region16
        $region15: #{tpu_custom_call.1} parent=11 // pred_region
          _
        $region16: #{tpu_custom_call.1} parent=11 // pred_fallthru
          _
        // Predicated region
        $region17: #{tpu_custom_call.1} parent=11 // pred_check
          %p162 = pneg %p95
        $region18: #{tpu_custom_call.1} parent=11 // pred_check_branch
          %164 = sbr.rel (%p162) target = $region20
        $region19: #{tpu_custom_call.1} parent=11 // pred_region
          _
        $region20: #{tpu_custom_call.1} parent=11 // pred_fallthru
          _
        // Predicated region
        $region21: #{tpu_custom_call.1} parent=11 // pred_check
          %p165 = pneg %p116
        $region22: #{tpu_custom_call.1} parent=11 // pred_check_branch
          %167 = sbr.rel (%p165) target = $region24
        $region23: #{tpu_custom_call.1} parent=11 // pred_region
          _
        $region24: #{tpu_custom_call.1} parent=11 // pred_fallthru
          _
      $region12: #{tpu_custom_call.1} parent=5 // pred_fallthru
        _
      %p168 = scmp.lt.s32.totalorder %s13, 2
      // Predicated region
      $region25: #{tpu_custom_call.1} parent=5 // pred_check
        %p169 = pneg %p168
      $region26: #{tpu_custom_call.1} parent=5 // pred_check_branch
        %171 = sbr.rel (%p169) target = $region28
      $region27: #{tpu_custom_call.1} parent=5 // pred_region
        // Predicated region
        $region29: #{tpu_custom_call.1} parent=27 // pred_check
          %p172 = pneg %p47
        $region30: #{tpu_custom_call.1} parent=27 // pred_check_branch
          %174 = sbr.rel (%p172) target = $region32
        $region31: #{tpu_custom_call.1} parent=27 // pred_region
          %s175 = smul.u32 2, %s21
          %p176 = scmp.lt.s32.totalorder %s20, 1
          %s177 = scalar_select %p176, %s20, 1
          %p178 = scmp.lt.s32.totalorder %s175, 1
          %s179 = scalar_select %p178, %s175, 1
          %s180 = smul.addr %s177, 2
          %s181 = sadd.s32 %s179, %s180
          %s182 = smul.addr %s181, 4
          %s183 = scalar_lea.vmem %s0, %s182
          %s184 = smul.u32 2, %s21
        $region32: #{tpu_custom_call.1} parent=27 // pred_fallthru
          _
      $region28: #{tpu_custom_call.1} parent=5 // pred_fallthru
        _
      %p185 = scmp.le.s32.totalorder 1, %s13
      %p186 = scmp.lt.s32.totalorder %s13, 3
      %p187 = pnand %p185, %p186
      %p188 = pneg %p187
      // Predicated region
      $region33: #{tpu_custom_call.1} parent=5 // pred_check
        _
      $region34: #{tpu_custom_call.1} parent=5 // pred_check_branch
        %190 = sbr.rel (%p187) target = $region36
      $region35: #{tpu_custom_call.1} parent=5 // pred_region
        %s191 = ssub.s32 %s13, 1
        %s192 = smul.u32 2, %s23
        %p193 = scmp.lt.s32.totalorder %s22, 1
        %s194 = scalar_select %p193, %s22, 1
        %p195 = scmp.lt.s32.totalorder %s192, 1
        %s196 = scalar_select %p195, %s192, 1
        %s197 = smul.addr %s194, 2
        %s198 = sadd.s32 %s196, %s197
        %s199 = smul.addr %s198, 4
        %s200 = scalar_lea.vmem %s0, %s199
        %p201 = pneg %p53
        %p202 = pneg %p50
        %p203 = pneg %p74
        %p204 = pneg %p71
        %p205 = pneg %p95
        %p206 = pneg %p92
        %p207 = pneg %p116
        %p208 = pneg %p113
        %p209 = pneg %p144
        %p210 = pneg %p141
        %s211 = sand.u32 %s131, 1
        %s212 = scalar_lea.sflag [#allocation3], %s211
        %s213 = sand.u32 %s131, 1
        %s214 = smul.addr %s213, 8
        %s215 = scalar_lea.vmem [#allocation2], %s214
        %s216 = smul.u32 2, %s23
        %p217 = scmp.lt.s32.totalorder %s22, 1
        %s218 = scalar_select %p217, %s22, 1
        %p219 = scmp.lt.s32.totalorder %s216, 1
        %s220 = scalar_select %p219, %s216, 1
        %s221 = smul.addr %s218, 2
        %s222 = sadd.s32 %s220, %s221
        %s223 = smul.addr %s222, 4
        %s224 = scalar_lea.vmem %s0, %s223
        %s225 = smul.u32 2, %s23
        %s226 = smul.u32 2, %s23
        %v227 = vld [vmem:[%s224] sm:$0xff]
        %v228 = vld [vmem:[%s1] sm:$0xff]
        %v229 = vld [vmem:[%s1 + $0x8] sm:$0xff]
        %v230 = vld [vmem:[%s1 + $0x10] sm:$0xff]
        %v231 = vld [vmem:[%s1 + $0x18] sm:$0xff]
        %v232 = vld [vmem:[%s2] sm:$0xf]
        %v233 = vld [vmem:[%s3] sm:$0xff]
        %v234 = vld [vmem:[%s3 + $0x8] sm:$0xff]
        %v235 = vld [vmem:[%s3 + $0x10] sm:$0xff]
        %v236 = vld [vmem:[%s3 + $0x18] sm:$0xff]
        %238 = vset.pattern.permute.xlu0 0
        %239 = vperm.xlu0 %238, %v233
        %v240 = vpop.permute.xlu0 %239
        %243 = vset.pattern.permute.xlu0 0
        %244 = vperm.xlu0 %243, %v234
        %v245 = vpop.permute.xlu0 %244
        %248 = vset.pattern.permute.xlu0 0
        %249 = vperm.xlu0 %248, %v235
        %v250 = vpop.permute.xlu0 %249
        %253 = vset.pattern.permute.xlu0 0
        %254 = vperm.xlu0 %253, %v236
        %v255 = vpop.permute.xlu0 %254
        %v258 = vcombine.high %v227, %v227
        %vm259 = vcmask 31744
        %v261 = vsel %vm259, %v228, 0
        %v264 = vsel %vm259, %v229, 0
        %v267 = vsel %vm259, %v230, 0
        %v270 = vsel %vm259, %v231, 0
        %vm272 = vcmask 1043456
        %v273 = vsel %vm272, %v227, 0
        %v275 = vsel %vm272, %v258, 0
        %277 = vmatprep.subr.mxu0 0.0
        %278 = vmatpush1.msra.mxu0 0.0
        %279 = vmatprep.subr.mxu0 0.0
        %280 = vmatpush1.msra.mxu0 0.0
        %281 = vmatprep.subr.mxu0 0.0
        %282 = vmatpush1.msra.mxu0 0.0
        %283 = vmatprep.subr.mxu0 0.0
        %284 = vmatpush1.msra.mxu0 0.0
        %285 = vmatprep.subr.mxu0 0.0
        %286 = vmatpush1.msra.mxu0 0.0
        %287 = vmatprep.subr.mxu0 0.0
        %288 = vmatpush1.msra.mxu0 0.0
        %289 = vmatprep.subr.mxu0 0.0
        %290 = vmatpush1.msra.mxu0 0.0
        %291 = vmatprep.subr.mxu0 0.0
        %292 = vmatpush1.msra.mxu0 0.0
        %293 = vmatprep.subr.mxu0 0.0
        %294 = vmatpush1.msra.mxu0 0.0
        %295 = vmatprep.subr.mxu0 0.0
        %296 = vmatpush1.msra.mxu0 0.0
        %297 = vmatprep.subr.mxu0 0.0
        %298 = vmatpush1.msra.mxu0 0.0
        %299 = vmatprep.subr.mxu0 0.0
        %300 = vmatpush1.msra.mxu0 0.0
        %301 = vmatprep.subr.mxu0 0.0
        %302 = vmatpush1.msra.mxu0 0.0
        %303 = vmatprep.subr.mxu0 0.0
        %304 = vmatpush1.msra.mxu0 0.0
        %305 = vmatprep.subr.mxu0 0.0
        %306 = vmatpush1.msra.mxu0 0.0
        %307 = vmatprep.subr.mxu0 %v275
        %308 = vmatpush1.msra.mxu0 %v273
        %309 = vmatprep.subr.mxu0 0.0
        %310 = vmatpush2.msra.mxu0 0.0
        %311 = vmatprep.subr.mxu0 0.0
        %312 = vmatpush2.msra.mxu0 0.0
        %313 = vmatprep.subr.mxu0 0.0
        %314 = vmatpush2.msra.mxu0 0.0
        %315 = vmatprep.subr.mxu0 0.0
        %316 = vmatpush2.msra.mxu0 0.0
        %317 = vmatprep.subr.mxu0 0.0
        %318 = vmatpush2.msra.mxu0 0.0
        %319 = vmatprep.subr.mxu0 0.0
        %320 = vmatpush2.msra.mxu0 0.0
        %321 = vmatprep.subr.mxu0 0.0
        %322 = vmatpush2.msra.mxu0 0.0
        %323 = vmatprep.subr.mxu0 0.0
        %324 = vmatpush2.msra.mxu0 0.0
        %325 = vmatprep.subr.mxu0 0.0
        %326 = vmatpush2.msra.mxu0 0.0
        %327 = vmatprep.subr.mxu0 0.0
        %328 = vmatpush2.msra.mxu0 0.0
        %329 = vmatprep.subr.mxu0 0.0
        %330 = vmatpush2.msra.mxu0 0.0
        %331 = vmatprep.subr.mxu0 0.0
        %332 = vmatpush2.msra.mxu0 0.0
        %333 = vmatprep.subr.mxu0 0.0
        %334 = vmatpush2.msra.mxu0 0.0
        %335 = vmatprep.subr.mxu0 0.0
        %336 = vmatpush2.msra.mxu0 0.0
        %337 = vmatprep.subr.mxu0 0.0
        %338 = vmatpush2.msra.mxu0 0.0
        %339 = vmatprep.subr.mxu0 0.0
        %340 = vmatpush2.msra.mxu0 0.0
        %341 = vmatprep.mubr.f32.mxu0 0.0
        %342 = vmatmul.mubr.f32.gmra.mxu0 %v261
        %v343 = vpop.f32.mrf.mxu0
        %v344 = vadd.f32 %v240, %v343
        %v345 = vpop.f32.mrf.mxu0
        %v346 = vadd.f32 %v240, %v345
        %347 = vmatprep.mubr.f32.mxu0 0.0
        %348 = vmatmul.mubr.f32.gmra.mxu0 %v264
        %v349 = vpop.f32.mrf.mxu0
        %v350 = vadd.f32 %v245, %v349
        %v351 = vpop.f32.mrf.mxu0
        %v352 = vadd.f32 %v245, %v351
        %353 = vmatprep.mubr.f32.mxu0 0.0
        %354 = vmatmul.mubr.f32.gmra.mxu0 %v267
        %v355 = vpop.f32.mrf.mxu0
        %v356 = vadd.f32 %v250, %v355
        %v357 = vpop.f32.mrf.mxu0
        %v358 = vadd.f32 %v250, %v357
        %359 = vmatprep.mubr.f32.mxu0 0.0
        %360 = vmatmul.mubr.f32.gmra.mxu0 %v270
        %v361 = vpop.f32.mrf.mxu0
        %v362 = vadd.f32 %v255, %v361
        %v363 = vpop.f32.mrf.mxu0
        %v364 = vadd.f32 %v255, %v363
        %365 = vdwg.mxu0
        %v366 = vlaneseq
        %v367 = vshrl.u32 %v366, 7
        %v368 = vadd.s32 %v367, 8
        %v369 = vadd.s32 %v367, 16
        %v370 = vadd.s32 %v367, 24
        %v371 = vmin.f32 %v344, %v356
        %v372 = vmin.f32 %v350, %v362
        %v373 = vmin.f32 %v371, %v372
        %v374 = vrot.slane %v373, 4
        %v375 = vmin.f32 %v373, %v374
        %v376 = vrot.slane %v375, 2
        %v377 = vmin.f32 %v375, %v376
        %v378 = vrot.slane %v377, 1
        %v379 = vmin.f32 %v377, %v378
        %v380 = vmin.f32 %v346, %v358
        %v381 = vmin.f32 %v352, %v364
        %v382 = vmin.f32 %v380, %v381
        %v383 = vrot.slane %v382, 4
        %v384 = vmin.f32 %v382, %v383
        %v385 = vrot.slane %v384, 2
        %v386 = vmin.f32 %v384, %v385
        %v387 = vrot.slane %v386, 1
        %v388 = vmin.f32 %v386, %v387
        %vm389 = vcmp.eq.f32.partialorder %v344, %v379
        %vm390 = vcmp.eq.f32.partialorder %v346, %v388
        %vm391 = vcmp.eq.f32.partialorder %v350, %v379
        %vm392 = vcmp.eq.f32.partialorder %v352, %v388
        %vm393 = vcmp.eq.f32.partialorder %v356, %v379
        %vm394 = vcmp.eq.f32.partialorder %v358, %v388
        %vm395 = vcmp.eq.f32.partialorder %v362, %v379
        %vm396 = vcmp.eq.f32.partialorder %v364, %v388
        %v397 = vsel %vm389, %v367, 32
        %v398 = vsel %vm390, %v367, 32
        %v399 = vsel %vm391, %v368, 32
        %v400 = vsel %vm392, %v368, 32
        %v401 = vsel %vm393, %v369, 32
        %v402 = vsel %vm394, %v369, 32
        %v403 = vsel %vm395, %v370, 32
        %v404 = vsel %vm396, %v370, 32
        %vm405 = vcmp.lt.s32.totalorder %v397, %v401
        %v406 = vsel %vm405, %v397, %v401
        %vm407 = vcmp.lt.s32.totalorder %v399, %v403
        %v408 = vsel %vm407, %v399, %v403
        %vm409 = vcmp.lt.s32.totalorder %v406, %v408
        %v410 = vsel %vm409, %v406, %v408
        %v411 = vrot.slane %v410, 4
        %vm412 = vcmp.lt.s32.totalorder %v410, %v411
        %v413 = vsel %vm412, %v410, %v411
        %v414 = vrot.slane %v413, 2
        %vm415 = vcmp.lt.s32.totalorder %v413, %v414
        %v416 = vsel %vm415, %v413, %v414
        %v417 = vrot.slane %v416, 1
        %vm418 = vcmp.lt.s32.totalorder %v416, %v417
        %v419 = vsel %vm418, %v416, %v417
        %vm420 = vcmp.lt.s32.totalorder %v398, %v402
        %v421 = vsel %vm420, %v398, %v402
        %vm422 = vcmp.lt.s32.totalorder %v400, %v404
        %v423 = vsel %vm422, %v400, %v404
        %vm424 = vcmp.lt.s32.totalorder %v421, %v423
        %v425 = vsel %vm424, %v421, %v423
        %v426 = vrot.slane %v425, 4
        %vm427 = vcmp.lt.s32.totalorder %v425, %v426
        %v428 = vsel %vm427, %v425, %v426
        %v429 = vrot.slane %v428, 2
        %vm430 = vcmp.lt.s32.totalorder %v428, %v429
        %v431 = vsel %vm430, %v428, %v429
        %v432 = vrot.slane %v431, 1
        %vm433 = vcmp.lt.s32.totalorder %v431, %v432
        %v434 = vsel %vm433, %v431, %v432
        %vm435 = vcmp.eq.s32.totalorder %v367, %v419
        %vm436 = vcmp.eq.s32.totalorder %v367, %v434
        %vm437 = vcmp.eq.s32.totalorder %v368, %v419
        %vm438 = vcmp.eq.s32.totalorder %v368, %v434
        %vm439 = vcmp.eq.s32.totalorder %v369, %v419
        %vm440 = vcmp.eq.s32.totalorder %v369, %v434
        %vm441 = vcmp.eq.s32.totalorder %v370, %v419
        %vm442 = vcmp.eq.s32.totalorder %v370, %v434
        %v443 = vsel %vm435, 1, 0
        %v444 = vsel %vm436, 1, 0
        %v445 = vsel %vm437, 1, 0
        %v446 = vsel %vm438, 1, 0
        %v447 = vsel %vm439, 1, 0
        %v448 = vsel %vm440, 1, 0
        %v449 = vsel %vm441, 1, 0
        %v450 = vsel %vm442, 1, 0
        %v451 = vcvt.s32.f32 %v443
        %v452 = vcvt.s32.f32 %v444
        %v453 = vcvt.s32.f32 %v445
        %v454 = vcvt.s32.f32 %v446
        %v455 = vcvt.s32.f32 %v447
        %v456 = vcvt.s32.f32 %v448
        %v457 = vcvt.s32.f32 %v449
        %v458 = vcvt.s32.f32 %v450
        %vm459 = vcmask 261120
        %v461 = vsel %vm459, %v232, 0
        %463 = vmatprep.subr.mxu0 0.0
        %464 = vmatpush1.msra.mxu0 0.0
        %465 = vmatprep.subr.mxu0 0.0
        %466 = vmatpush1.msra.mxu0 0.0
        %467 = vmatprep.subr.mxu0 0.0
        %468 = vmatpush1.msra.mxu0 0.0
        %469 = vmatprep.subr.mxu0 0.0
        %470 = vmatpush1.msra.mxu0 0.0
        %471 = vmatprep.subr.mxu0 0.0
        %472 = vmatpush1.msra.mxu0 0.0
        %473 = vmatprep.subr.mxu0 0.0
        %474 = vmatpush1.msra.mxu0 0.0
        %475 = vmatprep.subr.mxu0 0.0
        %476 = vmatpush1.msra.mxu0 0.0
        %477 = vmatprep.subr.mxu0 0.0
        %478 = vmatpush1.msra.mxu0 0.0
        %479 = vmatprep.subr.mxu0 0.0
        %480 = vmatpush1.msra.mxu0 0.0
        %481 = vmatprep.subr.mxu0 0.0
        %482 = vmatpush1.msra.mxu0 0.0
        %483 = vmatprep.subr.mxu0 0.0
        %484 = vmatpush1.msra.mxu0 0.0
        %485 = vmatprep.subr.mxu0 0.0
        %486 = vmatpush1.msra.mxu0 0.0
        %487 = vmatprep.subr.mxu0 %v458
        %488 = vmatpush1.msra.mxu0 %v457
        %489 = vmatprep.subr.mxu0 %v456
        %490 = vmatpush1.msra.mxu0 %v455
        %491 = vmatprep.subr.mxu0 %v454
        %492 = vmatpush1.msra.mxu0 %v453
        %493 = vmatprep.subr.mxu0 %v452
        %494 = vmatpush1.msra.mxu0 %v451
        %495 = vmatprep.subr.mxu0 0.0
        %496 = vmatpush2.msra.mxu0 0.0
        %497 = vmatprep.subr.mxu0 0.0
        %498 = vmatpush2.msra.mxu0 0.0
        %499 = vmatprep.subr.mxu0 0.0
        %500 = vmatpush2.msra.mxu0 0.0
        %501 = vmatprep.subr.mxu0 0.0
        %502 = vmatpush2.msra.mxu0 0.0
        %503 = vmatprep.subr.mxu0 0.0
        %504 = vmatpush2.msra.mxu0 0.0
        %505 = vmatprep.subr.mxu0 0.0
        %506 = vmatpush2.msra.mxu0 0.0
        %507 = vmatprep.subr.mxu0 0.0
        %508 = vmatpush2.msra.mxu0 0.0
        %509 = vmatprep.subr.mxu0 0.0
        %510 = vmatpush2.msra.mxu0 0.0
        %511 = vmatprep.subr.mxu0 0.0
        %512 = vmatpush2.msra.mxu0 0.0
        %513 = vmatprep.subr.mxu0 0.0
        %514 = vmatpush2.msra.mxu0 0.0
        %515 = vmatprep.subr.mxu0 0.0
        %516 = vmatpush2.msra.mxu0 0.0
        %517 = vmatprep.subr.mxu0 0.0
        %518 = vmatpush2.msra.mxu0 0.0
        %519 = vmatprep.subr.mxu0 0.0
        %520 = vmatpush2.msra.mxu0 0.0
        %521 = vmatprep.subr.mxu0 0.0
        %522 = vmatpush2.msra.mxu0 0.0
        %523 = vmatprep.subr.mxu0 0.0
        %524 = vmatpush2.msra.mxu0 0.0
        %525 = vmatprep.subr.mxu0 0.0
        %526 = vmatpush2.msra.mxu0 0.0
        %527 = vmatprep.mubr.f32.mxu0 0.0
        %528 = vmatmul.mubr.f32.gmra.mxu0 %v461
        %v529 = vpop.f32.mrf.mxu0
        %v530 = vadd.f32 0.0, %v529
        %v531 = vpop.f32.mrf.mxu0
        %v532 = vadd.f32 0.0, %v531
        %533 = vdwg.mxu0
        %v536 = vcombine.low %v530, %v532
        %538 = vst [vmem:[%s215] sm:$0xff] %v536
        %s539 = sand.u32 %s131, 1
        %s540 = scalar_lea.sflag [#allocation3], %s539
        %s541 = sand.u32 %s131, 1
        %s542 = smul.addr %s541, 8
        %s543 = scalar_lea.vmem [#allocation2], %s542
        // Predicated region
        $region37: #{tpu_custom_call.1} parent=35 // pred_check
          %p544 = pneg %p141
        $region38: #{tpu_custom_call.1} parent=35 // pred_check_branch
          %546 = sbr.rel (%p544) target = $region40
        $region39: #{tpu_custom_call.1} parent=35 // pred_region
          %s547 = smul.u32 2, %s23
          %s549 = ssub.s32 128, 128
          %550 = vsyncadd %s540, %s549
          %s551 = smul.addr %s22, 2
          %s552 = sadd.s32 %s547, %s551
          %s553 = smul.addr %s552, 64
          %s554 = scalar_lea.hbm %s4, %s553
          %s556 = sshll.u32 %s543, 4
          %s557 = int_to_ptr.vmem [resolvable:$true] %s556
          %559 = dma.vmem_to_hbm [thread:$0]  %s557, 128, %s554, %s540
        $region40: #{tpu_custom_call.1} parent=35 // pred_fallthru
          _
      $region36: #{tpu_custom_call.1} parent=5 // pred_fallthru
        _
      %p560 = scmp.le.s32.totalorder 2, %s13
      // Predicated region
      $region41: #{tpu_custom_call.1} parent=5 // pred_check
        %p561 = pneg %p560
      $region42: #{tpu_custom_call.1} parent=5 // pred_check_branch
        %563 = sbr.rel (%p561) target = $region44
      $region43: #{tpu_custom_call.1} parent=5 // pred_region
        %s564 = ssub.s32 %s13, 2
        // Predicated region
        $region45: #{tpu_custom_call.1} parent=43 // pred_check
          %p565 = pneg %p147
        $region46: #{tpu_custom_call.1} parent=43 // pred_check_branch
          %567 = sbr.rel (%p565) target = $region48
        $region47: #{tpu_custom_call.1} parent=43 // pred_region
          %s568 = sand.u32 %s132, 1
          %s569 = scalar_lea.sflag [#allocation3], %s568
          %s570 = sand.u32 %s132, 1
          %s571 = smul.addr %s570, 8
          %s572 = scalar_lea.vmem [#allocation2], %s571
          %573 = dma.done %s569, 128
        $region48: #{tpu_custom_call.1} parent=43 // pred_fallthru
          _
      $region44: #{tpu_custom_call.1} parent=5 // pred_fallthru
        _
    $region6: #{tpu_custom_call.1} parent=1 // loop_footer
      %s17 = sadd.s32 1, %s13
    $region7: #{tpu_custom_call.1} parent=1 // loop_footer_branch
      %12 = sbr.rel target = $region3
    $region8: #{tpu_custom_call.1} parent=1 // loop_exit
      _
    %574 = vsyncpa [#allocation3], 1
    %s575 = scalar_lea.sflag [#allocation3], 1
    %576 = vsyncpa %s575, 1

</llo_original>
